<compile_context>
chip_gen: v5e
topology: v5e:2x2
jax: 0.10.0
libtpu: 0.0.40
codegen_flags: <defaults>
</compile_context>

<pallas_src>
import jax
import jax.numpy as jnp
import numpy as np
from jax import lax
from jax.experimental import pallas as pl
from jax.experimental.pallas import tpu as pltpu

HIDDEN = 64
N_LAYER = 2


def _round_up(n, m):
    return ((n + m - 1) // m) * m


def rnn_kernel(x_ref, wih0_ref, whh0_ref, b0_ref, w1_ref, b1_ref,
               wout_ref, bout_ref,
               out_ref,
               h0_carry, h1_carry, pre0_scr, h1_stack):
    t_chunk, b_pad, hidden = pre0_scr.shape

    @pl.when(pl.program_id(0) == 0)
    def _():
        h0_carry[...] = jnp.zeros_like(h0_carry)
        h1_carry[...] = jnp.zeros_like(h1_carry)

    # ---- Hoisted, non-recurrent work for the whole chunk -------------------
    # layer-0 input contribution + combined bias for every timestep:
    # (T_CHUNK, B, 1) * (1, 64) + (1, 64) -> (T_CHUNK, B, 64)
    pre0_scr[...] = x_ref[...] * wih0_ref[...] + b0_ref[...]

    whh0 = whh0_ref[...]                                   # (64, 64)  = W_hh0^T
    w1 = w1_ref[...]                                       # (128, 64) = [W_ih1^T; W_hh1^T]
    b1 = jnp.broadcast_to(b1_ref[...], (b_pad, hidden))    # hoisted broadcast

    # ---- Serial recurrence over the chunk ----------------------------------
    def step(t, carry):
        h0, h1 = carry
        rec0 = jnp.dot(h0, whh0, preferred_element_type=jnp.float32)
        h0n = jnp.tanh(pre0_scr[t] + rec0)
        # fused layer-1: inp1 + rec1 = [h0_t, h1_{t-1}] @ [W_ih1^T; W_hh1^T]
        cat = jnp.concatenate([h0n, h1], axis=-1)          # (B, 128)
        h1n = jnp.tanh(jnp.dot(cat, w1, preferred_element_type=jnp.float32) + b1)
        h1_stack[t] = h1n
        return (h0n, h1n)

    unroll = True if t_chunk <= 32 else 8
    h0f, h1f = lax.fori_loop(0, t_chunk, step,
                             (h0_carry[...], h1_carry[...]),
                             unroll=unroll)
    h0_carry[...] = h0f
    h1_carry[...] = h1f

    # ---- Deferred output projection (once per chunk, lane-dense store) -----
    # y_tb: (T_CHUNK, B) = reduce_h(h1 * W_out) + b_out
    y_tb = jnp.sum(h1_stack[...] * wout_ref[...], axis=-1) + bout_ref[...]
    out_ref[...] = y_tb.T                                  # (B_pad, T_CHUNK)


def rnn_forward(x_btc, params, t_chunk=128):
    """x_btc: (B, T, 1) float32, matches the PyTorch batch_first input."""
    B, T, C = x_btc.shape
    assert C == 1

    (wih0, whh0_t, b0, w1, b1, wout, bout) = params

    # Pad batch to the f32 sublane multiple and time to a whole number of chunks.
    b_pad = _round_up(B, 8)
    t_chunk = min(t_chunk, _round_up(T, 8))
    t_pad = _round_up(T, t_chunk)
    n_chunks = t_pad // t_chunk

    x_tbc = jnp.transpose(x_btc, (1, 0, 2))                # (T, B, 1) time-major
    x_pad = jnp.zeros((t_pad, b_pad, 1), jnp.float32).at[:T, :B, :].set(x_tbc)

    w_full = lambda shape: pl.BlockSpec(shape, lambda c: tuple(0 for _ in shape))

    # TODO(synk): for large B, add a second "parallel" grid axis over batch tiles
    # (and on v7x shard it across the two TensorCores); the small test shapes here
    # fit a single tile.
    out_bt = pl.pallas_call(
        rnn_kernel,
        out_shape=jax.ShapeDtypeStruct((b_pad, t_pad), jnp.float32),
        grid_spec=pltpu.PrefetchScalarGridSpec(
            num_scalar_prefetch=0,
            grid=(n_chunks,),
            in_specs=[
                pl.BlockSpec((t_chunk, b_pad, 1), lambda c: (c, 0, 0)),  # x chunk
                w_full((1, HIDDEN)),            # W_ih0 as a row (1, 64)
                w_full((HIDDEN, HIDDEN)),       # W_hh0^T
                w_full((1, HIDDEN)),            # b_ih0 + b_hh0
                w_full((2 * HIDDEN, HIDDEN)),   # [W_ih1^T; W_hh1^T] stacked (128, 64)
                w_full((1, HIDDEN)),            # b_ih1 + b_hh1
                w_full((1, HIDDEN)),            # W_out as a row (1, 64)
                w_full((1, 1)),                 # b_out
            ],
            out_specs=pl.BlockSpec((b_pad, t_chunk), lambda c: (0, c)),
            scratch_shapes=[
                pltpu.VMEM((b_pad, HIDDEN), jnp.float32),            # h0 carry
                pltpu.VMEM((b_pad, HIDDEN), jnp.float32),            # h1 carry
                pltpu.VMEM((t_chunk, b_pad, HIDDEN), jnp.float32),   # pre0 chunk
                pltpu.VMEM((t_chunk, b_pad, HIDDEN), jnp.float32),   # h1 stack
            ],
        ),
        compiler_params=pltpu.CompilerParams(
            dimension_semantics=("arbitrary",)),   # time chunks are sequential
    )(x_pad, wih0, whh0_t, b0, w1, b1, wout, bout)

    return out_bt[:B, :T][..., None]               # (B, T, 1)


def init_params(key):
    """Deterministic init mimicking PyTorch's U(-1/sqrt(H), 1/sqrt(H))."""
    k = 1.0 / np.sqrt(HIDDEN)
    keys = jax.random.split(key, 11)
    u = lambda kk, shape: jax.random.uniform(kk, shape, jnp.float32, -k, k)

    w_ih0 = u(keys[0], (HIDDEN, 1))       # nn.RNN weight_ih_l0
    w_hh0 = u(keys[1], (HIDDEN, HIDDEN))  # weight_hh_l0
    b_ih0 = u(keys[2], (HIDDEN,))
    b_hh0 = u(keys[3], (HIDDEN,))
    w_ih1 = u(keys[4], (HIDDEN, HIDDEN))  # weight_ih_l1
    w_hh1 = u(keys[5], (HIDDEN, HIDDEN))  # weight_hh_l1
    b_ih1 = u(keys[6], (HIDDEN,))
    b_hh1 = u(keys[7], (HIDDEN,))
    w_out = u(keys[8], (1, HIDDEN))       # Linear(64,1).weight
    b_out = u(keys[9], (1,))              # Linear(64,1).bias

    # Repack for the kernel: transposed weights, combined biases, fused layer-1.
    params = (
        w_ih0.reshape(1, HIDDEN),                         # (1, 64)
        w_hh0.T,                                          # (64, 64)
        (b_ih0 + b_hh0).reshape(1, HIDDEN),               # (1, 64)
        jnp.concatenate([w_ih1.T, w_hh1.T], axis=0),      # (128, 64)
        (b_ih1 + b_hh1).reshape(1, HIDDEN),               # (1, 64)
        w_out.reshape(1, HIDDEN),                         # (1, 64)
        b_out.reshape(1, 1),                              # (1, 1)
    )
    raw = (w_ih0, w_hh0, b_ih0, b_hh0, w_ih1, w_hh1, b_ih1, b_hh1, w_out, b_out)
    return params, raw


def reference_forward(x_btc, raw):
    """Pure-JAX reference replicating the PyTorch module semantics."""
    (w_ih0, w_hh0, b_ih0, b_hh0, w_ih1, w_hh1, b_ih1, b_hh1, w_out, b_out) = raw
    B, T, _ = x_btc.shape
    h0 = jnp.zeros((B, HIDDEN), jnp.float32)
    h1 = jnp.zeros((B, HIDDEN), jnp.float32)
    ys = []
    for t in range(T):
        x_t = x_btc[:, t, :]                                   # (B, 1)
        h0 = jnp.tanh(x_t @ w_ih0.T + b_ih0 + h0 @ w_hh0.T + b_hh0)
        h1 = jnp.tanh(h0 @ w_ih1.T + b_ih1 + h1 @ w_hh1.T + b_hh1)
        ys.append(h1 @ w_out.T + b_out)                        # (B, 1)
    return jnp.stack(ys, axis=1)                               # (B, T, 1)


if __name__ == "__main__":
    key = jax.random.PRNGKey(0)
    kx, kp = jax.random.split(key)

    B, T = 2, 8
    x = jax.random.normal(kx, (B, T, 1), dtype=jnp.float32)

    params, raw = init_params(kp)

    out = rnn_forward(x, params)
    out = jax.block_until_ready(out)

    ref = reference_forward(x, raw)
    np.testing.assert_allclose(np.asarray(out), np.asarray(ref),
                               rtol=1e-5, atol=1e-5)

    assert out.shape == (B, T, 1)
    print("KERNEL_OK")
</pallas_src>

<mosaic_0001>
module attributes {stable_mosaic.version = 11 : i64} {
  func.func @rnn_kernel(%arg0: i32, %arg1: memref<8x8x1xf32, #tpu.memory_space<vmem>>, %arg2: memref<1x64xf32, #tpu.memory_space<vmem>>, %arg3: memref<64x64xf32, #tpu.memory_space<vmem>>, %arg4: memref<1x64xf32, #tpu.memory_space<vmem>>, %arg5: memref<128x64xf32, #tpu.memory_space<vmem>>, %arg6: memref<1x64xf32, #tpu.memory_space<vmem>>, %arg7: memref<1x64xf32, #tpu.memory_space<vmem>>, %arg8: memref<1x1xf32, #tpu.memory_space<vmem>>, %arg9: memref<8x8xf32, #tpu.memory_space<vmem>>, %arg10: memref<8x64xf32, #tpu.memory_space<vmem>>, %arg11: memref<8x64xf32, #tpu.memory_space<vmem>>, %arg12: memref<8x8x64xf32, #tpu.memory_space<vmem>>, %arg13: memref<8x8x64xf32, #tpu.memory_space<vmem>>) attributes {dimension_semantics = [#tpu.dimension_semantics<arbitrary>], iteration_bounds = array<i64: 1>, scalar_prefetch = 0 : i64, scratch_operands = 4 : i64, tpu.core_type = #tpu.core_type<tc>, window_params = [{transform_indices = @transform_0, window_bounds = array<i64: 8, 8, 1>}, {pipeline_mode = #tpu.pipeline_mode<synchronous>, transform_indices = @transform_1, window_bounds = array<i64: 1, 64>}, {pipeline_mode = #tpu.pipeline_mode<synchronous>, transform_indices = @transform_2, window_bounds = array<i64: 64, 64>}, {pipeline_mode = #tpu.pipeline_mode<synchronous>, transform_indices = @transform_3, window_bounds = array<i64: 1, 64>}, {pipeline_mode = #tpu.pipeline_mode<synchronous>, transform_indices = @transform_4, window_bounds = array<i64: 128, 64>}, {pipeline_mode = #tpu.pipeline_mode<synchronous>, transform_indices = @transform_5, window_bounds = array<i64: 1, 64>}, {pipeline_mode = #tpu.pipeline_mode<synchronous>, transform_indices = @transform_6, window_bounds = array<i64: 1, 64>}, {pipeline_mode = #tpu.pipeline_mode<synchronous>, transform_indices = @transform_7, window_bounds = array<i64: 1, 1>}, {transform_indices = @transform_8, window_bounds = array<i64: 8, 8>}]} {
    %c0_i32 = arith.constant 0 : i32
    %0 = arith.cmpi eq, %arg0, %c0_i32 : i32
    %1 = arith.extui %0 : i1 to i32
    %c0_i32_0 = arith.constant 0 : i32
    %2 = arith.cmpi ne, %1, %c0_i32_0 : i32
    scf.if %2 {
      %cst_82 = arith.constant 0.000000e+00 : f32
      %146 = vector.broadcast %cst_82 : f32 to vector<8x64xf32>
      %c0_83 = arith.constant 0 : index
      %c0_84 = arith.constant 0 : index
      %147 = vector.load %arg10[%c0_83, %c0_84] : memref<8x64xf32, #tpu.memory_space<vmem>>, vector<8x64xf32>
      tpu.vector_store %arg10[%c0_83, %c0_84], %146 {strides = array<i32>} : memref<8x64xf32, #tpu.memory_space<vmem>>, vector<8x64xf32>,
      %cst_85 = arith.constant 0.000000e+00 : f32
      %148 = vector.broadcast %cst_85 : f32 to vector<8x64xf32>
      %c0_86 = arith.constant 0 : index
      %c0_87 = arith.constant 0 : index
      %149 = vector.load %arg11[%c0_86, %c0_87] : memref<8x64xf32, #tpu.memory_space<vmem>>, vector<8x64xf32>
      tpu.vector_store %arg11[%c0_86, %c0_87], %148 {strides = array<i32>} : memref<8x64xf32, #tpu.memory_space<vmem>>, vector<8x64xf32>,
    } else {
    }
    %c0 = arith.constant 0 : index
    %c0_1 = arith.constant 0 : index
    %c0_2 = arith.constant 0 : index
    %3 = vector.load %arg1[%c0, %c0_1, %c0_2] : memref<8x8x1xf32, #tpu.memory_space<vmem>>, vector<8x8x1xf32>
    %c0_3 = arith.constant 0 : index
    %c0_4 = arith.constant 0 : index
    %4 = vector.load %arg2[%c0_3, %c0_4] : memref<1x64xf32, #tpu.memory_space<vmem>>, vector<1x64xf32>
    %5 = vector.shape_cast %4 : vector<1x64xf32> to vector<1x1x64xf32>
    %6 = vector.broadcast %3 : vector<8x8x1xf32> to vector<8x8x64xf32>
    %7 = vector.broadcast %5 : vector<1x1x64xf32> to vector<8x8x64xf32>
    %8 = arith.mulf %6, %7 : vector<8x8x64xf32>
    %c0_5 = arith.constant 0 : index
    %c0_6 = arith.constant 0 : index
    %9 = vector.load %arg4[%c0_5, %c0_6] : memref<1x64xf32, #tpu.memory_space<vmem>>, vector<1x64xf32>
    %10 = vector.shape_cast %9 : vector<1x64xf32> to vector<1x1x64xf32>
    %11 = vector.broadcast %10 : vector<1x1x64xf32> to vector<8x8x64xf32>
    %12 = arith.addf %8, %11 : vector<8x8x64xf32>
    %c0_7 = arith.constant 0 : index
    %c0_8 = arith.constant 0 : index
    %c0_9 = arith.constant 0 : index
    %13 = vector.load %arg12[%c0_7, %c0_8, %c0_9] : memref<8x8x64xf32, #tpu.memory_space<vmem>>, vector<8x8x64xf32>
    tpu.vector_store %arg12[%c0_7, %c0_8, %c0_9], %12 {strides = array<i32>} : memref<8x8x64xf32, #tpu.memory_space<vmem>>, vector<8x8x64xf32>,
    %c0_10 = arith.constant 0 : index
    %c0_11 = arith.constant 0 : index
    %14 = vector.load %arg3[%c0_10, %c0_11] : memref<64x64xf32, #tpu.memory_space<vmem>>, vector<64x64xf32>
    %c0_12 = arith.constant 0 : index
    %c0_13 = arith.constant 0 : index
    %15 = vector.load %arg5[%c0_12, %c0_13] : memref<128x64xf32, #tpu.memory_space<vmem>>, vector<128x64xf32>
    %c0_14 = arith.constant 0 : index
    %c0_15 = arith.constant 0 : index
    %16 = vector.load %arg6[%c0_14, %c0_15] : memref<1x64xf32, #tpu.memory_space<vmem>>, vector<1x64xf32>
    %17 = vector.shape_cast %16 : vector<1x64xf32> to vector<1x64xf32>
    %18 = vector.broadcast %17 : vector<1x64xf32> to vector<8x64xf32>
    %c0_16 = arith.constant 0 : index
    %c0_17 = arith.constant 0 : index
    %19 = vector.load %arg10[%c0_16, %c0_17] : memref<8x64xf32, #tpu.memory_space<vmem>>, vector<8x64xf32>
    %c0_18 = arith.constant 0 : index
    %c0_19 = arith.constant 0 : index
    %20 = vector.load %arg11[%c0_18, %c0_19] : memref<8x64xf32, #tpu.memory_space<vmem>>, vector<8x64xf32>
    %c0_i32_20 = arith.constant 0 : i32
    %cst = arith.constant dense<0.000000e+00> : vector<8x64xf32>
    %21 = tpu.matmul %19, %14, %cst {dimension_numbers = #tpu.dot_dimension_numbers<[1], [0], [0], [1], [0, 0, 1, 1], [], []>} : vector<8x64xf32>, vector<64x64xf32>, vector<8x64xf32> -> vector<8x64xf32>
    %22 = arith.index_cast %c0_i32_20 : i32 to index
    %c0_21 = arith.constant 0 : index
    %c0_22 = arith.constant 0 : index
    %23 = vector.load %arg12[%22, %c0_21, %c0_22] : memref<8x8x64xf32, #tpu.memory_space<vmem>>, vector<1x8x64xf32>
    %24 = vector.shape_cast %23 : vector<1x8x64xf32> to vector<8x64xf32>
    %25 = arith.addf %24, %21 : vector<8x64xf32>
    %26 = math.tanh %25 : vector<8x64xf32>
    %27 = tpu.concatenate %26, %20 in 1 : vector<8x64xf32>, vector<8x64xf32> -> vector<8x128xf32>
    %cst_23 = arith.constant dense<0.000000e+00> : vector<8x64xf32>
    %28 = tpu.matmul %27, %15, %cst_23 {dimension_numbers = #tpu.dot_dimension_numbers<[1], [0], [0], [1], [0, 0, 1, 1], [], []>} : vector<8x128xf32>, vector<128x64xf32>, vector<8x64xf32> -> vector<8x64xf32>
    %29 = arith.addf %28, %18 : vector<8x64xf32>
    %30 = math.tanh %29 : vector<8x64xf32>
    %31 = arith.index_cast %c0_i32_20 : i32 to index
    %c0_24 = arith.constant 0 : index
    %c0_25 = arith.constant 0 : index
    %32 = vector.load %arg13[%31, %c0_24, %c0_25] : memref<8x8x64xf32, #tpu.memory_space<vmem>>, vector<1x8x64xf32>
    %33 = vector.shape_cast %32 : vector<1x8x64xf32> to vector<8x64xf32>
    %34 = vector.shape_cast %30 : vector<8x64xf32> to vector<1x8x64xf32>
    tpu.vector_store %arg13[%31, %c0_24, %c0_25], %34 {strides = array<i32>} : memref<8x8x64xf32, #tpu.memory_space<vmem>>, vector<1x8x64xf32>,
    %c1_i32 = arith.constant 1 : i32
    %cst_26 = arith.constant dense<0.000000e+00> : vector<8x64xf32>
    %35 = tpu.matmul %26, %14, %cst_26 {dimension_numbers = #tpu.dot_dimension_numbers<[1], [0], [0], [1], [0, 0, 1, 1], [], []>} : vector<8x64xf32>, vector<64x64xf32>, vector<8x64xf32> -> vector<8x64xf32>
    %36 = arith.index_cast %c1_i32 : i32 to index
    %c0_27 = arith.constant 0 : index
    %c0_28 = arith.constant 0 : index
    %37 = vector.load %arg12[%36, %c0_27, %c0_28] : memref<8x8x64xf32, #tpu.memory_space<vmem>>, vector<1x8x64xf32>
    %38 = vector.shape_cast %37 : vector<1x8x64xf32> to vector<8x64xf32>
    %39 = arith.addf %38, %35 : vector<8x64xf32>
    %40 = math.tanh %39 : vector<8x64xf32>
    %41 = tpu.concatenate %40, %30 in 1 : vector<8x64xf32>, vector<8x64xf32> -> vector<8x128xf32>
    %cst_29 = arith.constant dense<0.000000e+00> : vector<8x64xf32>
    %42 = tpu.matmul %41, %15, %cst_29 {dimension_numbers = #tpu.dot_dimension_numbers<[1], [0], [0], [1], [0, 0, 1, 1], [], []>} : vector<8x128xf32>, vector<128x64xf32>, vector<8x64xf32> -> vector<8x64xf32>
    %43 = arith.addf %42, %18 : vector<8x64xf32>
    %44 = math.tanh %43 : vector<8x64xf32>
    %45 = arith.index_cast %c1_i32 : i32 to index
    %c0_30 = arith.constant 0 : index
    %c0_31 = arith.constant 0 : index
    %46 = vector.load %arg13[%45, %c0_30, %c0_31] : memref<8x8x64xf32, #tpu.memory_space<vmem>>, vector<1x8x64xf32>
    %47 = vector.shape_cast %46 : vector<1x8x64xf32> to vector<8x64xf32>
    %48 = vector.shape_cast %44 : vector<8x64xf32> to vector<1x8x64xf32>
    tpu.vector_store %arg13[%45, %c0_30, %c0_31], %48 {strides = array<i32>} : memref<8x8x64xf32, #tpu.memory_space<vmem>>, vector<1x8x64xf32>,
    %c2_i32 = arith.constant 2 : i32
    %cst_32 = arith.constant dense<0.000000e+00> : vector<8x64xf32>
    %49 = tpu.matmul %40, %14, %cst_32 {dimension_numbers = #tpu.dot_dimension_numbers<[1], [0], [0], [1], [0, 0, 1, 1], [], []>} : vector<8x64xf32>, vector<64x64xf32>, vector<8x64xf32> -> vector<8x64xf32>
    %50 = arith.index_cast %c2_i32 : i32 to index
    %c0_33 = arith.constant 0 : index
    %c0_34 = arith.constant 0 : index
    %51 = vector.load %arg12[%50, %c0_33, %c0_34] : memref<8x8x64xf32, #tpu.memory_space<vmem>>, vector<1x8x64xf32>
    %52 = vector.shape_cast %51 : vector<1x8x64xf32> to vector<8x64xf32>
    %53 = arith.addf %52, %49 : vector<8x64xf32>
    %54 = math.tanh %53 : vector<8x64xf32>
    %55 = tpu.concatenate %54, %44 in 1 : vector<8x64xf32>, vector<8x64xf32> -> vector<8x128xf32>
    %cst_35 = arith.constant dense<0.000000e+00> : vector<8x64xf32>
    %56 = tpu.matmul %55, %15, %cst_35 {dimension_numbers = #tpu.dot_dimension_numbers<[1], [0], [0], [1], [0, 0, 1, 1], [], []>} : vector<8x128xf32>, vector<128x64xf32>, vector<8x64xf32> -> vector<8x64xf32>
    %57 = arith.addf %56, %18 : vector<8x64xf32>
    %58 = math.tanh %57 : vector<8x64xf32>
    %59 = arith.index_cast %c2_i32 : i32 to index
    %c0_36 = arith.constant 0 : index
    %c0_37 = arith.constant 0 : index
    %60 = vector.load %arg13[%59, %c0_36, %c0_37] : memref<8x8x64xf32, #tpu.memory_space<vmem>>, vector<1x8x64xf32>
    %61 = vector.shape_cast %60 : vector<1x8x64xf32> to vector<8x64xf32>
    %62 = vector.shape_cast %58 : vector<8x64xf32> to vector<1x8x64xf32>
    tpu.vector_store %arg13[%59, %c0_36, %c0_37], %62 {strides = array<i32>} : memref<8x8x64xf32, #tpu.memory_space<vmem>>, vector<1x8x64xf32>,
    %c3_i32 = arith.constant 3 : i32
    %cst_38 = arith.constant dense<0.000000e+00> : vector<8x64xf32>
    %63 = tpu.matmul %54, %14, %cst_38 {dimension_numbers = #tpu.dot_dimension_numbers<[1], [0], [0], [1], [0, 0, 1, 1], [], []>} : vector<8x64xf32>, vector<64x64xf32>, vector<8x64xf32> -> vector<8x64xf32>
    %64 = arith.index_cast %c3_i32 : i32 to index
    %c0_39 = arith.constant 0 : index
    %c0_40 = arith.constant 0 : index
    %65 = vector.load %arg12[%64, %c0_39, %c0_40] : memref<8x8x64xf32, #tpu.memory_space<vmem>>, vector<1x8x64xf32>
    %66 = vector.shape_cast %65 : vector<1x8x64xf32> to vector<8x64xf32>
    %67 = arith.addf %66, %63 : vector<8x64xf32>
    %68 = math.tanh %67 : vector<8x64xf32>
    %69 = tpu.concatenate %68, %58 in 1 : vector<8x64xf32>, vector<8x64xf32> -> vector<8x128xf32>
    %cst_41 = arith.constant dense<0.000000e+00> : vector<8x64xf32>
    %70 = tpu.matmul %69, %15, %cst_41 {dimension_numbers = #tpu.dot_dimension_numbers<[1], [0], [0], [1], [0, 0, 1, 1], [], []>} : vector<8x128xf32>, vector<128x64xf32>, vector<8x64xf32> -> vector<8x64xf32>
    %71 = arith.addf %70, %18 : vector<8x64xf32>
    %72 = math.tanh %71 : vector<8x64xf32>
    %73 = arith.index_cast %c3_i32 : i32 to index
    %c0_42 = arith.constant 0 : index
    %c0_43 = arith.constant 0 : index
    %74 = vector.load %arg13[%73, %c0_42, %c0_43] : memref<8x8x64xf32, #tpu.memory_space<vmem>>, vector<1x8x64xf32>
    %75 = vector.shape_cast %74 : vector<1x8x64xf32> to vector<8x64xf32>
    %76 = vector.shape_cast %72 : vector<8x64xf32> to vector<1x8x64xf32>
    tpu.vector_store %arg13[%73, %c0_42, %c0_43], %76 {strides = array<i32>} : memref<8x8x64xf32, #tpu.memory_space<vmem>>, vector<1x8x64xf32>,
    %c4_i32 = arith.constant 4 : i32
    %cst_44 = arith.constant dense<0.000000e+00> : vector<8x64xf32>
    %77 = tpu.matmul %68, %14, %cst_44 {dimension_numbers = #tpu.dot_dimension_numbers<[1], [0], [0], [1], [0, 0, 1, 1], [], []>} : vector<8x64xf32>, vector<64x64xf32>, vector<8x64xf32> -> vector<8x64xf32>
    %78 = arith.index_cast %c4_i32 : i32 to index
    %c0_45 = arith.constant 0 : index
    %c0_46 = arith.constant 0 : index
    %79 = vector.load %arg12[%78, %c0_45, %c0_46] : memref<8x8x64xf32, #tpu.memory_space<vmem>>, vector<1x8x64xf32>
    %80 = vector.shape_cast %79 : vector<1x8x64xf32> to vector<8x64xf32>
    %81 = arith.addf %80, %77 : vector<8x64xf32>
    %82 = math.tanh %81 : vector<8x64xf32>
    %83 = tpu.concatenate %82, %72 in 1 : vector<8x64xf32>, vector<8x64xf32> -> vector<8x128xf32>
    %cst_47 = arith.constant dense<0.000000e+00> : vector<8x64xf32>
    %84 = tpu.matmul %83, %15, %cst_47 {dimension_numbers = #tpu.dot_dimension_numbers<[1], [0], [0], [1], [0, 0, 1, 1], [], []>} : vector<8x128xf32>, vector<128x64xf32>, vector<8x64xf32> -> vector<8x64xf32>
    %85 = arith.addf %84, %18 : vector<8x64xf32>
    %86 = math.tanh %85 : vector<8x64xf32>
    %87 = arith.index_cast %c4_i32 : i32 to index
    %c0_48 = arith.constant 0 : index
    %c0_49 = arith.constant 0 : index
    %88 = vector.load %arg13[%87, %c0_48, %c0_49] : memref<8x8x64xf32, #tpu.memory_space<vmem>>, vector<1x8x64xf32>
    %89 = vector.shape_cast %88 : vector<1x8x64xf32> to vector<8x64xf32>
    %90 = vector.shape_cast %86 : vector<8x64xf32> to vector<1x8x64xf32>
    tpu.vector_store %arg13[%87, %c0_48, %c0_49], %90 {strides = array<i32>} : memref<8x8x64xf32, #tpu.memory_space<vmem>>, vector<1x8x64xf32>,
    %c5_i32 = arith.constant 5 : i32
    %cst_50 = arith.constant dense<0.000000e+00> : vector<8x64xf32>
    %91 = tpu.matmul %82, %14, %cst_50 {dimension_numbers = #tpu.dot_dimension_numbers<[1], [0], [0], [1], [0, 0, 1, 1], [], []>} : vector<8x64xf32>, vector<64x64xf32>, vector<8x64xf32> -> vector<8x64xf32>
    %92 = arith.index_cast %c5_i32 : i32 to index
    %c0_51 = arith.constant 0 : index
    %c0_52 = arith.constant 0 : index
    %93 = vector.load %arg12[%92, %c0_51, %c0_52] : memref<8x8x64xf32, #tpu.memory_space<vmem>>, vector<1x8x64xf32>
    %94 = vector.shape_cast %93 : vector<1x8x64xf32> to vector<8x64xf32>
    %95 = arith.addf %94, %91 : vector<8x64xf32>
    %96 = math.tanh %95 : vector<8x64xf32>
    %97 = tpu.concatenate %96, %86 in 1 : vector<8x64xf32>, vector<8x64xf32> -> vector<8x128xf32>
    %cst_53 = arith.constant dense<0.000000e+00> : vector<8x64xf32>
    %98 = tpu.matmul %97, %15, %cst_53 {dimension_numbers = #tpu.dot_dimension_numbers<[1], [0], [0], [1], [0, 0, 1, 1], [], []>} : vector<8x128xf32>, vector<128x64xf32>, vector<8x64xf32> -> vector<8x64xf32>
    %99 = arith.addf %98, %18 : vector<8x64xf32>
    %100 = math.tanh %99 : vector<8x64xf32>
    %101 = arith.index_cast %c5_i32 : i32 to index
    %c0_54 = arith.constant 0 : index
    %c0_55 = arith.constant 0 : index
    %102 = vector.load %arg13[%101, %c0_54, %c0_55] : memref<8x8x64xf32, #tpu.memory_space<vmem>>, vector<1x8x64xf32>
    %103 = vector.shape_cast %102 : vector<1x8x64xf32> to vector<8x64xf32>
    %104 = vector.shape_cast %100 : vector<8x64xf32> to vector<1x8x64xf32>
    tpu.vector_store %arg13[%101, %c0_54, %c0_55], %104 {strides = array<i32>} : memref<8x8x64xf32, #tpu.memory_space<vmem>>, vector<1x8x64xf32>,
    %c6_i32 = arith.constant 6 : i32
    %cst_56 = arith.constant dense<0.000000e+00> : vector<8x64xf32>
    %105 = tpu.matmul %96, %14, %cst_56 {dimension_numbers = #tpu.dot_dimension_numbers<[1], [0], [0], [1], [0, 0, 1, 1], [], []>} : vector<8x64xf32>, vector<64x64xf32>, vector<8x64xf32> -> vector<8x64xf32>
    %106 = arith.index_cast %c6_i32 : i32 to index
    %c0_57 = arith.constant 0 : index
    %c0_58 = arith.constant 0 : index
    %107 = vector.load %arg12[%106, %c0_57, %c0_58] : memref<8x8x64xf32, #tpu.memory_space<vmem>>, vector<1x8x64xf32>
    %108 = vector.shape_cast %107 : vector<1x8x64xf32> to vector<8x64xf32>
    %109 = arith.addf %108, %105 : vector<8x64xf32>
    %110 = math.tanh %109 : vector<8x64xf32>
    %111 = tpu.concatenate %110, %100 in 1 : vector<8x64xf32>, vector<8x64xf32> -> vector<8x128xf32>
    %cst_59 = arith.constant dense<0.000000e+00> : vector<8x64xf32>
    %112 = tpu.matmul %111, %15, %cst_59 {dimension_numbers = #tpu.dot_dimension_numbers<[1], [0], [0], [1], [0, 0, 1, 1], [], []>} : vector<8x128xf32>, vector<128x64xf32>, vector<8x64xf32> -> vector<8x64xf32>
    %113 = arith.addf %112, %18 : vector<8x64xf32>
    %114 = math.tanh %113 : vector<8x64xf32>
    %115 = arith.index_cast %c6_i32 : i32 to index
    %c0_60 = arith.constant 0 : index
    %c0_61 = arith.constant 0 : index
    %116 = vector.load %arg13[%115, %c0_60, %c0_61] : memref<8x8x64xf32, #tpu.memory_space<vmem>>, vector<1x8x64xf32>
    %117 = vector.shape_cast %116 : vector<1x8x64xf32> to vector<8x64xf32>
    %118 = vector.shape_cast %114 : vector<8x64xf32> to vector<1x8x64xf32>
    tpu.vector_store %arg13[%115, %c0_60, %c0_61], %118 {strides = array<i32>} : memref<8x8x64xf32, #tpu.memory_space<vmem>>, vector<1x8x64xf32>,
    %c7_i32 = arith.constant 7 : i32
    %cst_62 = arith.constant dense<0.000000e+00> : vector<8x64xf32>
    %119 = tpu.matmul %110, %14, %cst_62 {dimension_numbers = #tpu.dot_dimension_numbers<[1], [0], [0], [1], [0, 0, 1, 1], [], []>} : vector<8x64xf32>, vector<64x64xf32>, vector<8x64xf32> -> vector<8x64xf32>
    %120 = arith.index_cast %c7_i32 : i32 to index
    %c0_63 = arith.constant 0 : index
    %c0_64 = arith.constant 0 : index
    %121 = vector.load %arg12[%120, %c0_63, %c0_64] : memref<8x8x64xf32, #tpu.memory_space<vmem>>, vector<1x8x64xf32>
    %122 = vector.shape_cast %121 : vector<1x8x64xf32> to vector<8x64xf32>
    %123 = arith.addf %122, %119 : vector<8x64xf32>
    %124 = math.tanh %123 : vector<8x64xf32>
    %125 = tpu.concatenate %124, %114 in 1 : vector<8x64xf32>, vector<8x64xf32> -> vector<8x128xf32>
    %cst_65 = arith.constant dense<0.000000e+00> : vector<8x64xf32>
    %126 = tpu.matmul %125, %15, %cst_65 {dimension_numbers = #tpu.dot_dimension_numbers<[1], [0], [0], [1], [0, 0, 1, 1], [], []>} : vector<8x128xf32>, vector<128x64xf32>, vector<8x64xf32> -> vector<8x64xf32>
    %127 = arith.addf %126, %18 : vector<8x64xf32>
    %128 = math.tanh %127 : vector<8x64xf32>
    %129 = arith.index_cast %c7_i32 : i32 to index
    %c0_66 = arith.constant 0 : index
    %c0_67 = arith.constant 0 : index
    %130 = vector.load %arg13[%129, %c0_66, %c0_67] : memref<8x8x64xf32, #tpu.memory_space<vmem>>, vector<1x8x64xf32>
    %131 = vector.shape_cast %130 : vector<1x8x64xf32> to vector<8x64xf32>
    %132 = vector.shape_cast %128 : vector<8x64xf32> to vector<1x8x64xf32>
    tpu.vector_store %arg13[%129, %c0_66, %c0_67], %132 {strides = array<i32>} : memref<8x8x64xf32, #tpu.memory_space<vmem>>, vector<1x8x64xf32>,
    %c8_i32 = arith.constant 8 : i32
    %c0_68 = arith.constant 0 : index
    %c0_69 = arith.constant 0 : index
    %133 = vector.load %arg10[%c0_68, %c0_69] : memref<8x64xf32, #tpu.memory_space<vmem>>, vector<8x64xf32>
    tpu.vector_store %arg10[%c0_68, %c0_69], %124 {strides = array<i32>} : memref<8x64xf32, #tpu.memory_space<vmem>>, vector<8x64xf32>,
    %c0_70 = arith.constant 0 : index
    %c0_71 = arith.constant 0 : index
    %134 = vector.load %arg11[%c0_70, %c0_71] : memref<8x64xf32, #tpu.memory_space<vmem>>, vector<8x64xf32>
    tpu.vector_store %arg11[%c0_70, %c0_71], %128 {strides = array<i32>} : memref<8x64xf32, #tpu.memory_space<vmem>>, vector<8x64xf32>,
    %c0_72 = arith.constant 0 : index
    %c0_73 = arith.constant 0 : index
    %c0_74 = arith.constant 0 : index
    %135 = vector.load %arg13[%c0_72, %c0_73, %c0_74] : memref<8x8x64xf32, #tpu.memory_space<vmem>>, vector<8x8x64xf32>
    %c0_75 = arith.constant 0 : index
    %c0_76 = arith.constant 0 : index
    %136 = vector.load %arg7[%c0_75, %c0_76] : memref<1x64xf32, #tpu.memory_space<vmem>>, vector<1x64xf32>
    %137 = vector.shape_cast %136 : vector<1x64xf32> to vector<1x1x64xf32>
    %138 = vector.broadcast %137 : vector<1x1x64xf32> to vector<8x8x64xf32>
    %139 = arith.mulf %135, %138 : vector<8x8x64xf32>
    %cst_77 = arith.constant dense<0.000000e+00> : vector<8x8xf32>
    %140 = vector.multi_reduction <add>, %139, %cst_77 [2] : vector<8x8x64xf32> to vector<8x8xf32>
    %c0_78 = arith.constant 0 : index
    %c0_79 = arith.constant 0 : index
    %141 = vector.load %arg8[%c0_78, %c0_79] : memref<1x1xf32, #tpu.memory_space<vmem>>, vector<1x1xf32>
    %142 = vector.broadcast %141 : vector<1x1xf32> to vector<8x8xf32>
    %143 = arith.addf %140, %142 : vector<8x8xf32>
    %144 = tpu.transpose %143, [1, 0] : vector<8x8xf32> -> vector<8x8xf32>
    %c0_80 = arith.constant 0 : index
    %c0_81 = arith.constant 0 : index
    %145 = vector.load %arg9[%c0_80, %c0_81] : memref<8x8xf32, #tpu.memory_space<vmem>>, vector<8x8xf32>
    tpu.vector_store %arg9[%c0_80, %c0_81], %144 {strides = array<i32>} : memref<8x8xf32, #tpu.memory_space<vmem>>, vector<8x8xf32>,
    return
  }
  func.func @transform_0(%arg0: i32) -> (i32, i32, i32) {
    %c0_i32 = arith.constant 0 : i32
    %c0_i32_0 = arith.constant 0 : i32
    %c0_i32_1 = arith.constant 0 : i32
    return %arg0, %c0_i32, %c0_i32_0 : i32, i32, i32
  }
  func.func @transform_1(%arg0: i32) -> (i32, i32) {
    %c0_i32 = arith.constant 0 : i32
    %c0_i32_0 = arith.constant 0 : i32
    %c0_i32_1 = arith.constant 0 : i32
    return %c0_i32, %c0_i32_0 : i32, i32
  }
  func.func @transform_2(%arg0: i32) -> (i32, i32) {
    %c0_i32 = arith.constant 0 : i32
    %c0_i32_0 = arith.constant 0 : i32
    %c0_i32_1 = arith.constant 0 : i32
    return %c0_i32, %c0_i32_0 : i32, i32
  }
  func.func @transform_3(%arg0: i32) -> (i32, i32) {
    %c0_i32 = arith.constant 0 : i32
    %c0_i32_0 = arith.constant 0 : i32
    %c0_i32_1 = arith.constant 0 : i32
    return %c0_i32, %c0_i32_0 : i32, i32
  }
  func.func @transform_4(%arg0: i32) -> (i32, i32) {
    %c0_i32 = arith.constant 0 : i32
    %c0_i32_0 = arith.constant 0 : i32
    %c0_i32_1 = arith.constant 0 : i32
    return %c0_i32, %c0_i32_0 : i32, i32
  }
  func.func @transform_5(%arg0: i32) -> (i32, i32) {
    %c0_i32 = arith.constant 0 : i32
    %c0_i32_0 = arith.constant 0 : i32
    %c0_i32_1 = arith.constant 0 : i32
    return %c0_i32, %c0_i32_0 : i32, i32
  }
  func.func @transform_6(%arg0: i32) -> (i32, i32) {
    %c0_i32 = arith.constant 0 : i32
    %c0_i32_0 = arith.constant 0 : i32
    %c0_i32_1 = arith.constant 0 : i32
    return %c0_i32, %c0_i32_0 : i32, i32
  }
  func.func @transform_7(%arg0: i32) -> (i32, i32) {
    %c0_i32 = arith.constant 0 : i32
    %c0_i32_0 = arith.constant 0 : i32
    %c0_i32_1 = arith.constant 0 : i32
    return %c0_i32, %c0_i32_0 : i32, i32
  }
  func.func @transform_8(%arg0: i32) -> (i32, i32) {
    %c0_i32 = arith.constant 0 : i32
    %c0_i32_0 = arith.constant 0 : i32
    return %c0_i32, %arg0 : i32, i32
  }
}

</mosaic_0001>

<llo_original>
// kernel: tpu_custom_call.1
$region0: #{tpu_custom_call.1}
  #allocation0 [shape = 'u32[]', space=smem, size = 0x4, offset = 0x4, fixed_abs, tag = 'smem constant byte address 0x4 - core index']
  #allocation1 [shape = 'u32[72,128]{1,0:T(1,128)}', space=vmem, size = 0x9000, scoped, tag = 'internal scratch']
  #allocation2 [shape = 'f32[8,64]{1,0:T(8,128)}', space=vmem, size = 0x1000, scoped, tag = 'scratch operand']
  #allocation3 [shape = 'f32[8,64]{1,0:T(8,128)}', space=vmem, size = 0x1000, scoped, tag = 'scratch operand']
  #allocation4 [shape = 'f32[8,8,64]{2,1,0:T(8,128)}', space=vmem, size = 0x8000, scoped, tag = 'scratch operand']
  #allocation5 [shape = 'f32[8,8,64]{2,1,0:T(8,128)}', space=vmem, size = 0x8000, scoped, tag = 'scratch operand']
  #allocation6 [shape = 'f32[1,1]{1,0:T(1,128)S(1)}', space=vmem, size = 0x200, scoped, tag = 'scoped memory for tpu_custom_call.1']
  %s0 = inlined_call_operand.vmem [shape: f32[8,8,1], index: 0, kind: input, shape index: {}]
  %s1 = inlined_call_operand.vmem [shape: f32[1,64], index: 1, kind: input, shape index: {}]
  %s2 = inlined_call_operand.vmem [shape: f32[64,64], index: 2, kind: input, shape index: {}]
  %s3 = inlined_call_operand.vmem [shape: f32[1,64], index: 3, kind: input, shape index: {}]
  %s4 = inlined_call_operand.vmem [shape: f32[128,64], index: 4, kind: input, shape index: {}]
  %s5 = inlined_call_operand.vmem [shape: f32[1,64], index: 5, kind: input, shape index: {}]
  %s6 = inlined_call_operand.vmem [shape: f32[1,64], index: 6, kind: input, shape index: {}]
  %s7 = inlined_call_operand.<no memory space> [shape: f32[1,1], index: 7, kind: input, shape index: {}]
  %s8 = inlined_call_operand.hbm [shape: f32[8,8], index: 8, kind: output, shape index: {}]
  %s9 = sld [smem:[#allocation0]]
  $region46: #{tpu_custom_call.1} parent=0
    _
  %s11 = ssub.s32 1, %s9
  %s12 = scalar_select 0, %s11, %s9
  %v13 = vstv %s7
  %14 = vst [vmem:[#allocation6] sm:$0x1] %v13
  $region1: #{tpu_custom_call.1} parent=0
    #allocation7 [shape = 'u8[4096]{0}', space=vmem, size = 0x1000, scoped, tag = 'output window, operand 0, single buffered']
    #allocation8 [shape = 's32[1]{0}', space=sflag, size = 0x4, scoped, tag = 'scoped memory for tpu_custom_call.1']
    %15 = vsyncpa [#allocation8], 0
    // Predicated region
    $region2: #{tpu_custom_call.1} parent=1 // pred_check
      _
    $region3: #{tpu_custom_call.1} parent=1 // pred_check_branch
      %17 = sbr.rel (0) target = $region5
    $region4: #{tpu_custom_call.1} parent=1 // pred_region
      _
    $region5: #{tpu_custom_call.1} parent=1 // pred_fallthru
      _
    // Predicated region
    $region6: #{tpu_custom_call.1} parent=1 // pred_check
      _
    $region7: #{tpu_custom_call.1} parent=1 // pred_check_branch
      %19 = sbr.rel (0) target = $region9
    $region8: #{tpu_custom_call.1} parent=1 // pred_region
      _
    $region9: #{tpu_custom_call.1} parent=1 // pred_fallthru
      _
    // Predicated region
    $region10: #{tpu_custom_call.1} parent=1 // pred_check
      _
    $region11: #{tpu_custom_call.1} parent=1 // pred_check_branch
      %21 = sbr.rel (0) target = $region13
    $region12: #{tpu_custom_call.1} parent=1 // pred_region
      _
    $region13: #{tpu_custom_call.1} parent=1 // pred_fallthru
      _
    // Predicated region
    $region14: #{tpu_custom_call.1} parent=1 // pred_check
      _
    $region15: #{tpu_custom_call.1} parent=1 // pred_check_branch
      %23 = sbr.rel (0) target = $region17
    $region16: #{tpu_custom_call.1} parent=1 // pred_region
      _
    $region17: #{tpu_custom_call.1} parent=1 // pred_fallthru
      _
    // Predicated region
    $region18: #{tpu_custom_call.1} parent=1 // pred_check
      _
    $region19: #{tpu_custom_call.1} parent=1 // pred_check_branch
      %25 = sbr.rel (0) target = $region21
    $region20: #{tpu_custom_call.1} parent=1 // pred_region
      _
    $region21: #{tpu_custom_call.1} parent=1 // pred_fallthru
      _
    // Predicated region
    $region22: #{tpu_custom_call.1} parent=1 // pred_check
      _
    $region23: #{tpu_custom_call.1} parent=1 // pred_check_branch
      %27 = sbr.rel (0) target = $region25
    $region24: #{tpu_custom_call.1} parent=1 // pred_region
      _
    $region25: #{tpu_custom_call.1} parent=1 // pred_fallthru
      _
    // Predicated region
    $region26: #{tpu_custom_call.1} parent=1 // pred_check
      _
    $region27: #{tpu_custom_call.1} parent=1 // pred_check_branch
      %29 = sbr.rel (0) target = $region29
    $region28: #{tpu_custom_call.1} parent=1 // pred_region
      _
    $region29: #{tpu_custom_call.1} parent=1 // pred_fallthru
      _
    // Predicated region
    $region30: #{tpu_custom_call.1} parent=1 // pred_check
      _
    $region31: #{tpu_custom_call.1} parent=1 // pred_check_branch
      %31 = sbr.rel (0) target = $region33
    $region32: #{tpu_custom_call.1} parent=1 // pred_region
      _
    $region33: #{tpu_custom_call.1} parent=1 // pred_fallthru
      _
    %p32 = scmp.eq.s32.totalorder 0, 0
    // Predicated region
    $region34: #{tpu_custom_call.1} parent=1 // pred_check
      %p33 = pneg %p32
    $region35: #{tpu_custom_call.1} parent=1 // pred_check_branch
      %35 = sbr.rel (%p33) target = $region37
    $region36: #{tpu_custom_call.1} parent=1 // pred_region
      %vm36 = vcmask 523264
      %37 = vst.msk [vmem:[#allocation2] sm:$0xff] %vm36, 0.0
      %38 = vst.msk [vmem:[#allocation3] sm:$0xff] %vm36, 0.0
    $region37: #{tpu_custom_call.1} parent=1 // pred_fallthru
      _
    %v39 = vld [vmem:[%s0] sm:$0xff]
    %v40 = vld [vmem:[%s0 + $0x8] sm:$0xff]
    %v41 = vld [vmem:[%s0 + $0x10] sm:$0xff]
    %v42 = vld [vmem:[%s0 + $0x18] sm:$0xff]
    %v43 = vld [vmem:[%s0 + $0x20] sm:$0xff]
    %v44 = vld [vmem:[%s0 + $0x28] sm:$0xff]
    %v45 = vld [vmem:[%s0 + $0x30] sm:$0xff]
    %v46 = vld [vmem:[%s0 + $0x38] sm:$0xff]
    %v47 = vld [vmem:[%s1] sm:$0x1]
    %49 = vset.pattern.permute.xlu0 0
    %50 = vperm.xlu0 %49, %v39
    %v51 = vpop.permute.xlu0 %50
    %54 = vset.pattern.permute.xlu0 0
    %55 = vperm.xlu0 %54, %v40
    %v56 = vpop.permute.xlu0 %55
    %59 = vset.pattern.permute.xlu0 0
    %60 = vperm.xlu0 %59, %v41
    %v61 = vpop.permute.xlu0 %60
    %64 = vset.pattern.permute.xlu0 0
    %65 = vperm.xlu0 %64, %v42
    %v66 = vpop.permute.xlu0 %65
    %69 = vset.pattern.permute.xlu0 0
    %70 = vperm.xlu0 %69, %v43
    %v71 = vpop.permute.xlu0 %70
    %74 = vset.pattern.permute.xlu0 0
    %75 = vperm.xlu0 %74, %v44
    %v76 = vpop.permute.xlu0 %75
    %79 = vset.pattern.permute.xlu0 0
    %80 = vperm.xlu0 %79, %v45
    %v81 = vpop.permute.xlu0 %80
    %84 = vset.pattern.permute.xlu0 0
    %85 = vperm.xlu0 %84, %v46
    %v86 = vpop.permute.xlu0 %85
    %v89 = vperm.slane %v47, 0
    %v91 = vmul.f32 %v51, %v89
    %v92 = vmul.f32 %v56, %v89
    %v93 = vmul.f32 %v61, %v89
    %v94 = vmul.f32 %v66, %v89
    %v95 = vmul.f32 %v71, %v89
    %v96 = vmul.f32 %v76, %v89
    %v97 = vmul.f32 %v81, %v89
    %v98 = vmul.f32 %v86, %v89
    %v99 = vld [vmem:[%s3] sm:$0x1]
    %v101 = vperm.slane %v99, 0
    %v103 = vadd.f32 %v91, %v101
    %v104 = vadd.f32 %v92, %v101
    %v105 = vadd.f32 %v93, %v101
    %v106 = vadd.f32 %v94, %v101
    %v107 = vadd.f32 %v95, %v101
    %v108 = vadd.f32 %v96, %v101
    %v109 = vadd.f32 %v97, %v101
    %v110 = vadd.f32 %v98, %v101
    %vm111 = vcmask 523264
    %112 = vst.msk [vmem:[#allocation4] sm:$0xff] %vm111, %v103
    %113 = vst.msk [vmem:[#allocation4 + $0x8] sm:$0xff] %vm111, %v104
    %114 = vst.msk [vmem:[#allocation4 + $0x10] sm:$0xff] %vm111, %v105
    %115 = vst.msk [vmem:[#allocation4 + $0x18] sm:$0xff] %vm111, %v106
    %116 = vst.msk [vmem:[#allocation4 + $0x20] sm:$0xff] %vm111, %v107
    %117 = vst.msk [vmem:[#allocation4 + $0x28] sm:$0xff] %vm111, %v108
    %118 = vst.msk [vmem:[#allocation4 + $0x30] sm:$0xff] %vm111, %v109
    %119 = vst.msk [vmem:[#allocation4 + $0x38] sm:$0xff] %vm111, %v110
    %v120 = vld [vmem:[%s2] sm:$0xff]
    %v121 = vld [vmem:[%s2 + $0x8] sm:$0xff]
    %v122 = vld [vmem:[%s2 + $0x10] sm:$0xff]
    %v123 = vld [vmem:[%s2 + $0x18] sm:$0xff]
    %v124 = vld [vmem:[%s2 + $0x20] sm:$0xff]
    %v125 = vld [vmem:[%s2 + $0x28] sm:$0xff]
    %v126 = vld [vmem:[%s2 + $0x30] sm:$0xff]
    %v127 = vld [vmem:[%s2 + $0x38] sm:$0xff]
    %v128 = vld [vmem:[%s4] sm:$0xff]
    %v129 = vld [vmem:[%s4 + $0x8] sm:$0xff]
    %v130 = vld [vmem:[%s4 + $0x10] sm:$0xff]
    %v131 = vld [vmem:[%s4 + $0x18] sm:$0xff]
    %v132 = vld [vmem:[%s4 + $0x20] sm:$0xff]
    %v133 = vld [vmem:[%s4 + $0x28] sm:$0xff]
    %v134 = vld [vmem:[%s4 + $0x30] sm:$0xff]
    %v135 = vld [vmem:[%s4 + $0x38] sm:$0xff]
    %v136 = vld [vmem:[%s4 + $0x40] sm:$0xff]
    %v137 = vld [vmem:[%s4 + $0x48] sm:$0xff]
    %v138 = vld [vmem:[%s4 + $0x50] sm:$0xff]
    %v139 = vld [vmem:[%s4 + $0x58] sm:$0xff]
    %v140 = vld [vmem:[%s4 + $0x60] sm:$0xff]
    %v141 = vld [vmem:[%s4 + $0x68] sm:$0xff]
    %v142 = vld [vmem:[%s4 + $0x70] sm:$0xff]
    %v143 = vld [vmem:[%s4 + $0x78] sm:$0xff]
    %v144 = vld [vmem:[%s5] sm:$0x1]
    %v146 = vperm.slane %v144, 0
    %v148 = vld [vmem:[#allocation2] sm:$0xff]
    %v149 = vld [vmem:[#allocation3] sm:$0xff]
    %v151 = vsel %vm111, %v148, 0
    %153 = vmatpush.msra.mxu0 0.0
    %154 = vmatpush.msra.mxu0 0.0
    %155 = vmatpush.msra.mxu0 0.0
    %156 = vmatpush.msra.mxu0 0.0
    %157 = vmatpush.msra.mxu0 0.0
    %158 = vmatpush.msra.mxu0 0.0
    %159 = vmatpush.msra.mxu0 0.0
    %160 = vmatpush.msra.mxu0 0.0
    %161 = vmatpush.msra.mxu0 %v127
    %162 = vmatpush.msra.mxu0 %v126
    %163 = vmatpush.msra.mxu0 %v125
    %164 = vmatpush.msra.mxu0 %v124
    %165 = vmatpush.msra.mxu0 %v123
    %166 = vmatpush.msra.mxu0 %v122
    %167 = vmatpush.msra.mxu0 %v121
    %168 = vmatpush.msra.mxu0 %v120
    %169 = vmatmul.f32.gmra.mxu0 %v151
    %v170 = vpop.f32.mrf.mxu0
    %v171 = vadd.f32 0.0, %v170
    %172 = vdwg.mxu0
    %v173 = vld [vmem:[#allocation4] sm:$0xff]
    %v174 = vadd.f32 %v173, %v171
    %v175 = vtanh.pop %v174
    %177 = vrot.lane.b32.xlu0 %v149, 64
    %v178 = vpop.permute.xlu0 %177
    %v180 = vsel %vm111, %v175, %v178
    %181 = vmatpush.msra.mxu0 %v143
    %182 = vmatpush.msra.mxu0 %v142
    %183 = vmatpush.msra.mxu0 %v141
    %184 = vmatpush.msra.mxu0 %v140
    %185 = vmatpush.msra.mxu0 %v139
    %186 = vmatpush.msra.mxu0 %v138
    %187 = vmatpush.msra.mxu0 %v137
    %188 = vmatpush.msra.mxu0 %v136
    %189 = vmatpush.msra.mxu0 %v135
    %190 = vmatpush.msra.mxu0 %v134
    %191 = vmatpush.msra.mxu0 %v133
    %192 = vmatpush.msra.mxu0 %v132
    %193 = vmatpush.msra.mxu0 %v131
    %194 = vmatpush.msra.mxu0 %v130
    %195 = vmatpush.msra.mxu0 %v129
    %196 = vmatpush.msra.mxu0 %v128
    %197 = vmatmul.f32.gmra.mxu0 %v180
    %v198 = vpop.f32.mrf.mxu0
    %v199 = vadd.f32 %v146, %v198
    %200 = vdwg.mxu0
    %v201 = vtanh.pop %v199
    %202 = vst.msk [vmem:[#allocation5] sm:$0xff] %vm111, %v201
    %v204 = vsel %vm111, %v175, 0
    %206 = vmatpush.msra.mxu0 0.0
    %207 = vmatpush.msra.mxu0 0.0
    %208 = vmatpush.msra.mxu0 0.0
    %209 = vmatpush.msra.mxu0 0.0
    %210 = vmatpush.msra.mxu0 0.0
    %211 = vmatpush.msra.mxu0 0.0
    %212 = vmatpush.msra.mxu0 0.0
    %213 = vmatpush.msra.mxu0 0.0
    %214 = vmatpush.msra.mxu0 %v127
    %215 = vmatpush.msra.mxu0 %v126
    %216 = vmatpush.msra.mxu0 %v125
    %217 = vmatpush.msra.mxu0 %v124
    %218 = vmatpush.msra.mxu0 %v123
    %219 = vmatpush.msra.mxu0 %v122
    %220 = vmatpush.msra.mxu0 %v121
    %221 = vmatpush.msra.mxu0 %v120
    %222 = vmatmul.f32.gmra.mxu0 %v204
    %v223 = vpop.f32.mrf.mxu0
    %v224 = vadd.f32 0.0, %v223
    %225 = vdwg.mxu0
    %s226 = scalar_lea.vmem [#allocation4], 8
    %v227 = vld [vmem:[%s226] sm:$0xff]
    %v228 = vadd.f32 %v227, %v224
    %v229 = vtanh.pop %v228
    %231 = vrot.lane.b32.xlu0 %v201, 64
    %v232 = vpop.permute.xlu0 %231
    %v234 = vsel %vm111, %v229, %v232
    %235 = vmatpush.msra.mxu0 %v143
    %236 = vmatpush.msra.mxu0 %v142
    %237 = vmatpush.msra.mxu0 %v141
    %238 = vmatpush.msra.mxu0 %v140
    %239 = vmatpush.msra.mxu0 %v139
    %240 = vmatpush.msra.mxu0 %v138
    %241 = vmatpush.msra.mxu0 %v137
    %242 = vmatpush.msra.mxu0 %v136
    %243 = vmatpush.msra.mxu0 %v135
    %244 = vmatpush.msra.mxu0 %v134
    %245 = vmatpush.msra.mxu0 %v133
    %246 = vmatpush.msra.mxu0 %v132
    %247 = vmatpush.msra.mxu0 %v131
    %248 = vmatpush.msra.mxu0 %v130
    %249 = vmatpush.msra.mxu0 %v129
    %250 = vmatpush.msra.mxu0 %v128
    %251 = vmatmul.f32.gmra.mxu0 %v234
    %v252 = vpop.f32.mrf.mxu0
    %v253 = vadd.f32 %v146, %v252
    %254 = vdwg.mxu0
    %v255 = vtanh.pop %v253
    %s256 = scalar_lea.vmem [#allocation5], 8
    %257 = vst.msk [vmem:[%s256] sm:$0xff] %vm111, %v255
    %v259 = vsel %vm111, %v229, 0
    %261 = vmatpush.msra.mxu0 0.0
    %262 = vmatpush.msra.mxu0 0.0
    %263 = vmatpush.msra.mxu0 0.0
    %264 = vmatpush.msra.mxu0 0.0
    %265 = vmatpush.msra.mxu0 0.0
    %266 = vmatpush.msra.mxu0 0.0
    %267 = vmatpush.msra.mxu0 0.0
    %268 = vmatpush.msra.mxu0 0.0
    %269 = vmatpush.msra.mxu0 %v127
    %270 = vmatpush.msra.mxu0 %v126
    %271 = vmatpush.msra.mxu0 %v125
    %272 = vmatpush.msra.mxu0 %v124
    %273 = vmatpush.msra.mxu0 %v123
    %274 = vmatpush.msra.mxu0 %v122
    %275 = vmatpush.msra.mxu0 %v121
    %276 = vmatpush.msra.mxu0 %v120
    %277 = vmatmul.f32.gmra.mxu0 %v259
    %v278 = vpop.f32.mrf.mxu0
    %v279 = vadd.f32 0.0, %v278
    %280 = vdwg.mxu0
    %s281 = scalar_lea.vmem [#allocation4], 16
    %v282 = vld [vmem:[%s281] sm:$0xff]
    %v283 = vadd.f32 %v282, %v279
    %v284 = vtanh.pop %v283
    %286 = vrot.lane.b32.xlu0 %v255, 64
    %v287 = vpop.permute.xlu0 %286
    %v289 = vsel %vm111, %v284, %v287
    %290 = vmatpush.msra.mxu0 %v143
    %291 = vmatpush.msra.mxu0 %v142
    %292 = vmatpush.msra.mxu0 %v141
    %293 = vmatpush.msra.mxu0 %v140
    %294 = vmatpush.msra.mxu0 %v139
    %295 = vmatpush.msra.mxu0 %v138
    %296 = vmatpush.msra.mxu0 %v137
    %297 = vmatpush.msra.mxu0 %v136
    %298 = vmatpush.msra.mxu0 %v135
    %299 = vmatpush.msra.mxu0 %v134
    %300 = vmatpush.msra.mxu0 %v133
    %301 = vmatpush.msra.mxu0 %v132
    %302 = vmatpush.msra.mxu0 %v131
    %303 = vmatpush.msra.mxu0 %v130
    %304 = vmatpush.msra.mxu0 %v129
    %305 = vmatpush.msra.mxu0 %v128
    %306 = vmatmul.f32.gmra.mxu0 %v289
    %v307 = vpop.f32.mrf.mxu0
    %v308 = vadd.f32 %v146, %v307
    %309 = vdwg.mxu0
    %v310 = vtanh.pop %v308
    %s311 = scalar_lea.vmem [#allocation5], 16
    %312 = vst.msk [vmem:[%s311] sm:$0xff] %vm111, %v310
    %v314 = vsel %vm111, %v284, 0
    %316 = vmatpush.msra.mxu0 0.0
    %317 = vmatpush.msra.mxu0 0.0
    %318 = vmatpush.msra.mxu0 0.0
    %319 = vmatpush.msra.mxu0 0.0
    %320 = vmatpush.msra.mxu0 0.0
    %321 = vmatpush.msra.mxu0 0.0
    %322 = vmatpush.msra.mxu0 0.0
    %323 = vmatpush.msra.mxu0 0.0
    %324 = vmatpush.msra.mxu0 %v127
    %325 = vmatpush.msra.mxu0 %v126
    %326 = vmatpush.msra.mxu0 %v125
    %327 = vmatpush.msra.mxu0 %v124
    %328 = vmatpush.msra.mxu0 %v123
    %329 = vmatpush.msra.mxu0 %v122
    %330 = vmatpush.msra.mxu0 %v121
    %331 = vmatpush.msra.mxu0 %v120
    %332 = vmatmul.f32.gmra.mxu0 %v314
    %v333 = vpop.f32.mrf.mxu0
    %v334 = vadd.f32 0.0, %v333
    %335 = vdwg.mxu0
    %s336 = scalar_lea.vmem [#allocation4], 24
    %v337 = vld [vmem:[%s336] sm:$0xff]
    %v338 = vadd.f32 %v337, %v334
    %v339 = vtanh.pop %v338
    %341 = vrot.lane.b32.xlu0 %v310, 64
    %v342 = vpop.permute.xlu0 %341
    %v344 = vsel %vm111, %v339, %v342
    %345 = vmatpush.msra.mxu0 %v143
    %346 = vmatpush.msra.mxu0 %v142
    %347 = vmatpush.msra.mxu0 %v141
    %348 = vmatpush.msra.mxu0 %v140
    %349 = vmatpush.msra.mxu0 %v139
    %350 = vmatpush.msra.mxu0 %v138
    %351 = vmatpush.msra.mxu0 %v137
    %352 = vmatpush.msra.mxu0 %v136
    %353 = vmatpush.msra.mxu0 %v135
    %354 = vmatpush.msra.mxu0 %v134
    %355 = vmatpush.msra.mxu0 %v133
    %356 = vmatpush.msra.mxu0 %v132
    %357 = vmatpush.msra.mxu0 %v131
    %358 = vmatpush.msra.mxu0 %v130
    %359 = vmatpush.msra.mxu0 %v129
    %360 = vmatpush.msra.mxu0 %v128
    %361 = vmatmul.f32.gmra.mxu0 %v344
    %v362 = vpop.f32.mrf.mxu0
    %v363 = vadd.f32 %v146, %v362
    %364 = vdwg.mxu0
    %v365 = vtanh.pop %v363
    %s366 = scalar_lea.vmem [#allocation5], 24
    %367 = vst.msk [vmem:[%s366] sm:$0xff] %vm111, %v365
    %v369 = vsel %vm111, %v339, 0
    %371 = vmatpush.msra.mxu0 0.0
    %372 = vmatpush.msra.mxu0 0.0
    %373 = vmatpush.msra.mxu0 0.0
    %374 = vmatpush.msra.mxu0 0.0
    %375 = vmatpush.msra.mxu0 0.0
    %376 = vmatpush.msra.mxu0 0.0
    %377 = vmatpush.msra.mxu0 0.0
    %378 = vmatpush.msra.mxu0 0.0
    %379 = vmatpush.msra.mxu0 %v127
    %380 = vmatpush.msra.mxu0 %v126
    %381 = vmatpush.msra.mxu0 %v125
    %382 = vmatpush.msra.mxu0 %v124
    %383 = vmatpush.msra.mxu0 %v123
    %384 = vmatpush.msra.mxu0 %v122
    %385 = vmatpush.msra.mxu0 %v121
    %386 = vmatpush.msra.mxu0 %v120
    %387 = vmatmul.f32.gmra.mxu0 %v369
    %v388 = vpop.f32.mrf.mxu0
    %v389 = vadd.f32 0.0, %v388
    %390 = vdwg.mxu0
    %s391 = scalar_lea.vmem [#allocation4], 32
    %v392 = vld [vmem:[%s391] sm:$0xff]
    %v393 = vadd.f32 %v392, %v389
    %v394 = vtanh.pop %v393
    %396 = vrot.lane.b32.xlu0 %v365, 64
    %v397 = vpop.permute.xlu0 %396
    %v399 = vsel %vm111, %v394, %v397
    %400 = vmatpush.msra.mxu0 %v143
    %401 = vmatpush.msra.mxu0 %v142
    %402 = vmatpush.msra.mxu0 %v141
    %403 = vmatpush.msra.mxu0 %v140
    %404 = vmatpush.msra.mxu0 %v139
    %405 = vmatpush.msra.mxu0 %v138
    %406 = vmatpush.msra.mxu0 %v137
    %407 = vmatpush.msra.mxu0 %v136
    %408 = vmatpush.msra.mxu0 %v135
    %409 = vmatpush.msra.mxu0 %v134
    %410 = vmatpush.msra.mxu0 %v133
    %411 = vmatpush.msra.mxu0 %v132
    %412 = vmatpush.msra.mxu0 %v131
    %413 = vmatpush.msra.mxu0 %v130
    %414 = vmatpush.msra.mxu0 %v129
    %415 = vmatpush.msra.mxu0 %v128
    %416 = vmatmul.f32.gmra.mxu0 %v399
    %v417 = vpop.f32.mrf.mxu0
    %v418 = vadd.f32 %v146, %v417
    %419 = vdwg.mxu0
    %v420 = vtanh.pop %v418
    %s421 = scalar_lea.vmem [#allocation5], 32
    %422 = vst.msk [vmem:[%s421] sm:$0xff] %vm111, %v420
    %v424 = vsel %vm111, %v394, 0
    %426 = vmatpush.msra.mxu0 0.0
    %427 = vmatpush.msra.mxu0 0.0
    %428 = vmatpush.msra.mxu0 0.0
    %429 = vmatpush.msra.mxu0 0.0
    %430 = vmatpush.msra.mxu0 0.0
    %431 = vmatpush.msra.mxu0 0.0
    %432 = vmatpush.msra.mxu0 0.0
    %433 = vmatpush.msra.mxu0 0.0
    %434 = vmatpush.msra.mxu0 %v127
    %435 = vmatpush.msra.mxu0 %v126
    %436 = vmatpush.msra.mxu0 %v125
    %437 = vmatpush.msra.mxu0 %v124
    %438 = vmatpush.msra.mxu0 %v123
    %439 = vmatpush.msra.mxu0 %v122
    %440 = vmatpush.msra.mxu0 %v121
    %441 = vmatpush.msra.mxu0 %v120
    %442 = vmatmul.f32.gmra.mxu0 %v424
    %v443 = vpop.f32.mrf.mxu0
    %v444 = vadd.f32 0.0, %v443
    %445 = vdwg.mxu0
    %s446 = scalar_lea.vmem [#allocation4], 40
    %v447 = vld [vmem:[%s446] sm:$0xff]
    %v448 = vadd.f32 %v447, %v444
    %v449 = vtanh.pop %v448
    %451 = vrot.lane.b32.xlu0 %v420, 64
    %v452 = vpop.permute.xlu0 %451
    %v454 = vsel %vm111, %v449, %v452
    %455 = vmatpush.msra.mxu0 %v143
    %456 = vmatpush.msra.mxu0 %v142
    %457 = vmatpush.msra.mxu0 %v141
    %458 = vmatpush.msra.mxu0 %v140
    %459 = vmatpush.msra.mxu0 %v139
    %460 = vmatpush.msra.mxu0 %v138
    %461 = vmatpush.msra.mxu0 %v137
    %462 = vmatpush.msra.mxu0 %v136
    %463 = vmatpush.msra.mxu0 %v135
    %464 = vmatpush.msra.mxu0 %v134
    %465 = vmatpush.msra.mxu0 %v133
    %466 = vmatpush.msra.mxu0 %v132
    %467 = vmatpush.msra.mxu0 %v131
    %468 = vmatpush.msra.mxu0 %v130
    %469 = vmatpush.msra.mxu0 %v129
    %470 = vmatpush.msra.mxu0 %v128
    %471 = vmatmul.f32.gmra.mxu0 %v454
    %v472 = vpop.f32.mrf.mxu0
    %v473 = vadd.f32 %v146, %v472
    %474 = vdwg.mxu0
    %v475 = vtanh.pop %v473
    %s476 = scalar_lea.vmem [#allocation5], 40
    %477 = vst.msk [vmem:[%s476] sm:$0xff] %vm111, %v475
    %v479 = vsel %vm111, %v449, 0
    %481 = vmatpush.msra.mxu0 0.0
    %482 = vmatpush.msra.mxu0 0.0
    %483 = vmatpush.msra.mxu0 0.0
    %484 = vmatpush.msra.mxu0 0.0
    %485 = vmatpush.msra.mxu0 0.0
    %486 = vmatpush.msra.mxu0 0.0
    %487 = vmatpush.msra.mxu0 0.0
    %488 = vmatpush.msra.mxu0 0.0
    %489 = vmatpush.msra.mxu0 %v127
    %490 = vmatpush.msra.mxu0 %v126
    %491 = vmatpush.msra.mxu0 %v125
    %492 = vmatpush.msra.mxu0 %v124
    %493 = vmatpush.msra.mxu0 %v123
    %494 = vmatpush.msra.mxu0 %v122
    %495 = vmatpush.msra.mxu0 %v121
    %496 = vmatpush.msra.mxu0 %v120
    %497 = vmatmul.f32.gmra.mxu0 %v479
    %v498 = vpop.f32.mrf.mxu0
    %v499 = vadd.f32 0.0, %v498
    %500 = vdwg.mxu0
    %s501 = scalar_lea.vmem [#allocation4], 48
    %v502 = vld [vmem:[%s501] sm:$0xff]
    %v503 = vadd.f32 %v502, %v499
    %v504 = vtanh.pop %v503
    %506 = vrot.lane.b32.xlu0 %v475, 64
    %v507 = vpop.permute.xlu0 %506
    %v509 = vsel %vm111, %v504, %v507
    %510 = vmatpush.msra.mxu0 %v143
    %511 = vmatpush.msra.mxu0 %v142
    %512 = vmatpush.msra.mxu0 %v141
    %513 = vmatpush.msra.mxu0 %v140
    %514 = vmatpush.msra.mxu0 %v139
    %515 = vmatpush.msra.mxu0 %v138
    %516 = vmatpush.msra.mxu0 %v137
    %517 = vmatpush.msra.mxu0 %v136
    %518 = vmatpush.msra.mxu0 %v135
    %519 = vmatpush.msra.mxu0 %v134
    %520 = vmatpush.msra.mxu0 %v133
    %521 = vmatpush.msra.mxu0 %v132
    %522 = vmatpush.msra.mxu0 %v131
    %523 = vmatpush.msra.mxu0 %v130
    %524 = vmatpush.msra.mxu0 %v129
    %525 = vmatpush.msra.mxu0 %v128
    %526 = vmatmul.f32.gmra.mxu0 %v509
    %v527 = vpop.f32.mrf.mxu0
    %v528 = vadd.f32 %v146, %v527
    %529 = vdwg.mxu0
    %v530 = vtanh.pop %v528
    %s531 = scalar_lea.vmem [#allocation5], 48
    %532 = vst.msk [vmem:[%s531] sm:$0xff] %vm111, %v530
    %v534 = vsel %vm111, %v504, 0
    %536 = vmatpush.msra.mxu0 0.0
    %537 = vmatpush.msra.mxu0 0.0
    %538 = vmatpush.msra.mxu0 0.0
    %539 = vmatpush.msra.mxu0 0.0
    %540 = vmatpush.msra.mxu0 0.0
    %541 = vmatpush.msra.mxu0 0.0
    %542 = vmatpush.msra.mxu0 0.0
    %543 = vmatpush.msra.mxu0 0.0
    %544 = vmatpush.msra.mxu0 %v127
    %545 = vmatpush.msra.mxu0 %v126
    %546 = vmatpush.msra.mxu0 %v125
    %547 = vmatpush.msra.mxu0 %v124
    %548 = vmatpush.msra.mxu0 %v123
    %549 = vmatpush.msra.mxu0 %v122
    %550 = vmatpush.msra.mxu0 %v121
    %551 = vmatpush.msra.mxu0 %v120
    %552 = vmatmul.f32.gmra.mxu0 %v534
    %v553 = vpop.f32.mrf.mxu0
    %v554 = vadd.f32 0.0, %v553
    %555 = vdwg.mxu0
    %s556 = scalar_lea.vmem [#allocation4], 56
    %v557 = vld [vmem:[%s556] sm:$0xff]
    %v558 = vadd.f32 %v557, %v554
    %v559 = vtanh.pop %v558
    %561 = vrot.lane.b32.xlu0 %v530, 64
    %v562 = vpop.permute.xlu0 %561
    %v564 = vsel %vm111, %v559, %v562
    %565 = vmatpush.msra.mxu0 %v143
    %566 = vmatpush.msra.mxu0 %v142
    %567 = vmatpush.msra.mxu0 %v141
    %568 = vmatpush.msra.mxu0 %v140
    %569 = vmatpush.msra.mxu0 %v139
    %570 = vmatpush.msra.mxu0 %v138
    %571 = vmatpush.msra.mxu0 %v137
    %572 = vmatpush.msra.mxu0 %v136
    %573 = vmatpush.msra.mxu0 %v135
    %574 = vmatpush.msra.mxu0 %v134
    %575 = vmatpush.msra.mxu0 %v133
    %576 = vmatpush.msra.mxu0 %v132
    %577 = vmatpush.msra.mxu0 %v131
    %578 = vmatpush.msra.mxu0 %v130
    %579 = vmatpush.msra.mxu0 %v129
    %580 = vmatpush.msra.mxu0 %v128
    %581 = vmatmul.f32.gmra.mxu0 %v564
    %v582 = vpop.f32.mrf.mxu0
    %v583 = vadd.f32 %v146, %v582
    %584 = vdwg.mxu0
    %v585 = vtanh.pop %v583
    %s586 = scalar_lea.vmem [#allocation5], 56
    %587 = vst.msk [vmem:[%s586] sm:$0xff] %vm111, %v585
    %588 = vst.msk [vmem:[#allocation2] sm:$0xff] %vm111, %v559
    %589 = vst.msk [vmem:[#allocation3] sm:$0xff] %vm111, %v585
    %v590 = vld [vmem:[#allocation5] sm:$0xff]
    %v591 = vld [vmem:[#allocation5 + $0x8] sm:$0xff]
    %v592 = vld [vmem:[#allocation5 + $0x10] sm:$0xff]
    %v593 = vld [vmem:[#allocation5 + $0x18] sm:$0xff]
    %v594 = vld [vmem:[#allocation5 + $0x20] sm:$0xff]
    %v595 = vld [vmem:[#allocation5 + $0x28] sm:$0xff]
    %v596 = vld [vmem:[#allocation5 + $0x30] sm:$0xff]
    %v597 = vld [vmem:[#allocation5 + $0x38] sm:$0xff]
    %v598 = vld [vmem:[%s6] sm:$0x1]
    %v600 = vperm.slane %v598, 0
    %v602 = vmul.f32 %v590, %v600
    %v603 = vmul.f32 %v591, %v600
    %v604 = vmul.f32 %v592, %v600
    %v605 = vmul.f32 %v593, %v600
    %v606 = vmul.f32 %v594, %v600
    %v607 = vmul.f32 %v595, %v600
    %v608 = vmul.f32 %v596, %v600
    %v609 = vmul.f32 %v597, %v600
    %v610 = vsel %vm111, %v602, 0.0
    %611 = vadd.xlane.f32.xlu0 %v610
    %v612 = vpop.xlane.xlu0 %611
    %v613 = vsel %vm111, %v603, 0.0
    %614 = vadd.xlane.f32.xlu0 %v613
    %v615 = vpop.xlane.xlu0 %614
    %v616 = vsel %vm111, %v604, 0.0
    %617 = vadd.xlane.f32.xlu0 %v616
    %v618 = vpop.xlane.xlu0 %617
    %v619 = vsel %vm111, %v605, 0.0
    %620 = vadd.xlane.f32.xlu0 %v619
    %v621 = vpop.xlane.xlu0 %620
    %v622 = vsel %vm111, %v606, 0.0
    %623 = vadd.xlane.f32.xlu0 %v622
    %v624 = vpop.xlane.xlu0 %623
    %v625 = vsel %vm111, %v607, 0.0
    %626 = vadd.xlane.f32.xlu0 %v625
    %v627 = vpop.xlane.xlu0 %626
    %v628 = vsel %vm111, %v608, 0.0
    %629 = vadd.xlane.f32.xlu0 %v628
    %v630 = vpop.xlane.xlu0 %629
    %v631 = vsel %vm111, %v609, 0.0
    %632 = vadd.xlane.f32.xlu0 %v631
    %v633 = vpop.xlane.xlu0 %632
    %v634 = vld [vmem:[#allocation6] sm:$0x1]
    %v636 = vperm.slane %v634, 0
    %637 = vset.pattern.permute.xlu0 0
    %638 = vperm.xlu0 %637, %v636
    %v639 = vpop.permute.xlu0 %638
    %v641 = vadd.f32 %v612, %v639
    %v642 = vadd.f32 %v615, %v639
    %v643 = vadd.f32 %v618, %v639
    %v644 = vadd.f32 %v621, %v639
    %v645 = vadd.f32 %v624, %v639
    %v646 = vadd.f32 %v627, %v639
    %v647 = vadd.f32 %v630, %v639
    %v648 = vadd.f32 %v633, %v639
    %v657 = vlaneseq
    %v658 = vand.u32 %v657, 127
    %v659 = vperm.slane %v641, %v658
    %v660 = vperm.slane %v642, %v658
    %v661 = vperm.slane %v643, %v658
    %v662 = vperm.slane %v644, %v658
    %v663 = vperm.slane %v645, %v658
    %v664 = vperm.slane %v646, %v658
    %v665 = vperm.slane %v647, %v658
    %v666 = vperm.slane %v648, %v658
    %vm667 = vcmask 1041409
    %v668 = vsel %vm667, %v660, %v659
    %vm669 = vcmask 1042434
    %v670 = vsel %vm669, %v661, %v668
    %vm671 = vcmask 1043459
    %v672 = vsel %vm671, %v662, %v670
    %vm673 = vcmask 1044484
    %v674 = vsel %vm673, %v663, %v672
    %vm675 = vcmask 1045509
    %v676 = vsel %vm675, %v664, %v674
    %vm677 = vcmask 1046534
    %v678 = vsel %vm677, %v665, %v676
    %vm679 = vcmask 1047559
    %v680 = vsel %vm679, %v666, %v678
    %682 = vxpose.xlu0.b32.start [1/16] %v680, 128
    %683 = vxpose.xlu0.b32.cont [2/16] 0.0, 128
    %684 = vxpose.xlu0.b32.cont [3/16] 0.0, 128
    %685 = vxpose.xlu0.b32.cont [4/16] 0.0, 128
    %686 = vxpose.xlu0.b32.cont [5/16] 0.0, 128
    %687 = vxpose.xlu0.b32.cont [6/16] 0.0, 128
    %688 = vxpose.xlu0.b32.cont [7/16] 0.0, 128
    %689 = vxpose.xlu0.b32.cont [8/16] 0.0, 128
    %690 = vxpose.xlu0.b32.cont [9/16] 0.0, 128
    %691 = vxpose.xlu0.b32.cont [10/16] 0.0, 128
    %692 = vxpose.xlu0.b32.cont [11/16] 0.0, 128
    %693 = vxpose.xlu0.b32.cont [12/16] 0.0, 128
    %694 = vxpose.xlu0.b32.cont [13/16] 0.0, 128
    %695 = vxpose.xlu0.b32.cont [14/16] 0.0, 128
    %696 = vxpose.xlu0.b32.cont [15/16] 0.0, 128
    %697 = vxpose.xlu0.b32.end [16/16] 0.0, 128
    %v698 = vpop.trf.xlu0
    %v699 = vpop.trf.xlu0
    %v700 = vpop.trf.xlu0
    %v701 = vpop.trf.xlu0
    %v702 = vpop.trf.xlu0
    %v703 = vpop.trf.xlu0
    %v704 = vpop.trf.xlu0
    %v705 = vpop.trf.xlu0
    %v706 = vpop.trf.xlu0
    %v707 = vpop.trf.xlu0
    %v708 = vpop.trf.xlu0
    %v709 = vpop.trf.xlu0
    %v710 = vpop.trf.xlu0
    %v711 = vpop.trf.xlu0
    %v712 = vpop.trf.xlu0
    %v713 = vpop.trf.xlu0
    %vm714 = vcmask 64512
    %715 = vst.msk [vmem:[#allocation7] sm:$0xff] %vm714, %v698
    // Predicated region
    $region38: #{tpu_custom_call.1} parent=1 // pred_check
      _
    $region39: #{tpu_custom_call.1} parent=1 // pred_check_branch
      %717 = sbr.rel (0) target = $region41
    $region40: #{tpu_custom_call.1} parent=1 // pred_region
      %719 = vsyncadd [#allocation8], 0
      %s721 = sshll.u32 [#allocation7], 4
      %s722 = int_to_ptr.vmem [resolvable:$true] %s721
      %s723 = sshll.u32 %s8, 4
      %s724 = int_to_ptr.hbm [resolvable:$true] %s723
      %726 = dma.vmem_to_hbm [thread:$0]  %s722, 128, %s724, [#allocation8]
    $region41: #{tpu_custom_call.1} parent=1 // pred_fallthru
      _
    // Predicated region
    $region42: #{tpu_custom_call.1} parent=1 // pred_check
      _
    $region43: #{tpu_custom_call.1} parent=1 // pred_check_branch
      %728 = sbr.rel (0) target = $region45
    $region44: #{tpu_custom_call.1} parent=1 // pred_region
      %730 = dma.done [#allocation8], 128
    $region45: #{tpu_custom_call.1} parent=1 // pred_fallthru
      _
    %731 = vsyncpa [#allocation8], 1

</llo_original>
